<compile_context>
chip_gen: v5e
topology: v5e:2x2
jax: 0.10.0
libtpu: 0.0.40
codegen_flags: <defaults>
</compile_context>

<pallas_src>
import functools

import jax
import jax.numpy as jnp
from jax.experimental import pallas as pl
from jax.experimental.pallas import tpu as pltpu


_MIN_SCALE = 0.001
_MAX_SCALE = 100.0


def _halfnormal_scale_kernel(x_ref, w_ref, b_ref, o_ref):
    """One streamed row-tile of: fc(dmodel -> 1) + softplus constraint + clamp.

    x_ref: (tile_rows, dmodel) f32/bf16 VMEM  -- streamed representation tile
    w_ref: (1, dmodel)         f32 VMEM       -- fc weight (out_features == 1)
    b_ref: (1,)                f32 SMEM       -- fc bias (scalar)
    o_ref: (tile_rows, 1)      f32 VMEM       -- HalfNormal scale in [MIN, MAX]
    """
    x = x_ref[...].astype(jnp.float32)              # (tile_rows, dmodel)
    w = w_ref[...].astype(jnp.float32)              # (1, dmodel) -> row broadcast
    b = b_ref[0]                                    # scalar from SMEM

    # Linear with a single output feature: VPU multiply + cross-lane reduce
    # (an MXU matmul here would waste 127/128 of the array).
    params = jnp.sum(x * w, axis=-1, keepdims=True) + b          # (tile_rows, 1)

    # Constraint: numerically-stable softplus, clamped to [min_value, max_value].
    sp = jnp.log1p(jnp.exp(-jnp.abs(params))) + jnp.maximum(params, 0.0)
    o_ref[...] = jnp.clip(sp, _MIN_SCALE, _MAX_SCALE)


def _round_up(x, m):
    return ((x + m - 1) // m) * m


def _vmem_capacity_bytes():
    try:
        return int(pltpu.get_tpu_info().vmem_capacity_bytes)
    except Exception:
        return 64 * 1024 * 1024          # conservative (v7x per-core VMEM)


def _pick_tile_rows(rows, dmodel, in_bytes_per_elem, vmem_cap):
    # Keep the double-buffered streaming input inside ~1/4 of physical VMEM,
    # leaving room for output buffers and compiler scratch.  E.g. at
    # dmodel=1024 f32: tile <= 4096 rows on v5e/v6e (128 MiB), <= 2048 on
    # v7x (64 MiB) -- big enough to amortize the ~0.35 us/step grid overhead.
    budget = vmem_cap // 4
    per_row = 2 * dmodel * in_bytes_per_elem + 2 * 4     # 2 bufs in + out
    tile = budget // max(per_row, 1)
    tile = min(tile, 8192)                               # diminishing returns
    tile = min(tile, _round_up(max(rows, 1), 8))         # don't over-pad tiny inputs
    tile = max(8, (tile // 8) * 8)                       # sublane multiple
    return int(tile)


@functools.partial(jax.jit, static_argnames=("tile_rows",))
def halfnormal_scale(representation, weight, bias, *, tile_rows=None):
    """Compute the HalfNormal scale parameter with one fused, streamed Pallas kernel.

    representation: (..., dmodel) f32 or bf16
    weight:         (1, dmodel)   f32   (out_features must be 1)
    bias:           (1,)          f32
    returns scale:  (..., 1)      f32
    """
    *lead, dmodel = representation.shape
    rows = 1
    for d in lead:
        rows *= d
    rows = max(rows, 1)

    in_bpe = jnp.dtype(representation.dtype).itemsize
    vmem_cap = _vmem_capacity_bytes()
    if tile_rows is None:
        tile = _pick_tile_rows(rows, dmodel, in_bpe, vmem_cap)
    else:
        tile = max(8, (int(tile_rows) // 8) * 8)

    rows_padded = _round_up(rows, tile)
    grid = (rows_padded // tile,)

    # Lane-dense 2D flattening + padding to a tile multiple done in the wrapper.
    x2d = representation.reshape(rows, dmodel)
    if rows_padded != rows:
        x2d = jnp.pad(x2d, ((0, rows_padded - rows), (0, 0)))
    w2d = weight.reshape(1, dmodel).astype(jnp.float32)
    b1 = bias.reshape(1).astype(jnp.float32)

    vmem_limit = int(max(32 * 1024 * 1024,
                         min(vmem_cap * 3 // 4, 96 * 1024 * 1024)))

    scale2d = pl.pallas_call(
        _halfnormal_scale_kernel,
        out_shape=jax.ShapeDtypeStruct((rows_padded, 1), jnp.float32),
        grid=grid,
        in_specs=[
            pl.BlockSpec((tile, dmodel), lambda i: (i, 0)),        # streamed rows
            pl.BlockSpec((1, dmodel), lambda i: (0, 0)),           # resident weight
            pl.BlockSpec(memory_space=pltpu.MemorySpace.SMEM),     # scalar bias
        ],
        out_specs=pl.BlockSpec((tile, 1), lambda i: (i, 0)),
        compiler_params=pltpu.CompilerParams(
            dimension_semantics=("parallel",),   # shard rows across v7x's 2 TCs
            vmem_limit_bytes=vmem_limit,
        ),
        cost_estimate=pl.CostEstimate(
            flops=2 * rows * dmodel,
            transcendentals=2 * rows,
            bytes_accessed=rows * dmodel * in_bpe + dmodel * 4 + rows * 4,
        ),
    )(x2d, w2d, b1)

    return scale2d[:rows].reshape(*lead, 1)


class HalfNormal:
    """Minimal JAX stand-in for torch.distributions.HalfNormal."""

    def __init__(self, scale):
        self.scale = scale

    def mean(self):
        return self.scale * jnp.sqrt(2.0 / jnp.pi)

    def log_prob(self, value):
        var = self.scale * self.scale
        lp = (jnp.log(2.0)
              - 0.5 * jnp.log(2.0 * jnp.pi * var)
              - 0.5 * (value * value) / var)
        # HalfNormal has support [0, inf): mask negative values like torch.
        return jnp.where(value >= 0, lp, -jnp.inf)


class HalfNormalDistribution:
    """JAX/Pallas port of the PyTorch HalfNormalDistribution module."""

    def __init__(self, dmodel, out_features=1, key=None):
        assert out_features == 1, "kernel is specialized for out_features=1 (module default)"
        if key is None:
            key = jax.random.PRNGKey(0)
        kw, kb = jax.random.split(key)
        bound = 1.0 / (dmodel ** 0.5)          # torch.nn.Linear default init range
        self.weight = jax.random.uniform(kw, (out_features, dmodel),
                                         jnp.float32, -bound, bound)
        self.bias = jax.random.uniform(kb, (out_features,),
                                       jnp.float32, -bound, bound)
        self.min_value = _MIN_SCALE
        self.max_value = _MAX_SCALE

    def forward(self, representation):
        scale = halfnormal_scale(representation, self.weight, self.bias)
        return HalfNormal(scale)

    __call__ = forward


def _reference_scale(x, w, b):
    """Pure-JAX reference: Linear + softplus constraint + clamp."""
    params = x @ w.T + b
    sp = jnp.logaddexp(params, 0.0)
    return jnp.clip(sp, _MIN_SCALE, _MAX_SCALE)


if __name__ == "__main__":
    key = jax.random.PRNGKey(0)
    kx, kmod, kx2 = jax.random.split(key, 3)

    # Small shapes implied by the forward: a sequence of dmodel-sized features.
    batch, seq, dmodel = 2, 8, 32
    x = jax.random.normal(kx, (batch, seq, dmodel), dtype=jnp.float32)

    mod = HalfNormalDistribution(dmodel=dmodel, out_features=1, key=kmod)

    # 1) Main path: single-tile grid, f32 input.
    dist = mod(x)
    scale = jax.block_until_ready(dist.scale)
    assert scale.shape == (batch, seq, 1) and scale.dtype == jnp.float32
    assert bool(jnp.all(scale >= _MIN_SCALE)) and bool(jnp.all(scale <= _MAX_SCALE))
    ref = _reference_scale(x, mod.weight, mod.bias)
    assert bool(jnp.allclose(scale, ref, atol=1e-5, rtol=1e-5))

    # 2) Multi-tile grid + ragged-row padding path (forced small tile).
    rows2, dmodel2 = 300, 64
    x2 = jax.random.normal(kx2, (rows2, dmodel2), dtype=jnp.float32)
    mod2 = HalfNormalDistribution(dmodel=dmodel2, out_features=1, key=kmod)
    s2 = jax.block_until_ready(
        halfnormal_scale(x2, mod2.weight, mod2.bias, tile_rows=128))
    ref2 = _reference_scale(x2, mod2.weight, mod2.bias)
    assert s2.shape == (rows2, 1)
    assert bool(jnp.allclose(s2, ref2, atol=1e-5, rtol=1e-5))

    # 3) bf16 streaming input (halves HBM bytes; kernel upcasts to f32).
    xb = x.astype(jnp.bfloat16)
    sb = jax.block_until_ready(halfnormal_scale(xb, mod.weight, mod.bias))
    refb = _reference_scale(xb.astype(jnp.float32), mod.weight, mod.bias)
    assert bool(jnp.allclose(sb, refb, atol=2e-2, rtol=2e-2))

    # Distribution helpers are finite / consistent with the scale.
    assert bool(jnp.all(jnp.isfinite(dist.mean())))
    assert bool(jnp.all(jnp.isfinite(dist.log_prob(jnp.abs(scale)))))
    assert bool(jnp.all(jnp.isneginf(dist.log_prob(-jnp.ones_like(scale)))))

    print("KERNEL_OK")
</pallas_src>

<mosaic_0001>
module attributes {stable_mosaic.version = 11 : i64} {
  func.func @_halfnormal_scale_kernel(%arg0: i32, %arg1: memref<16x32xf32, #tpu.memory_space<vmem>>, %arg2: memref<1x32xf32, #tpu.memory_space<vmem>>, %arg3: memref<1xf32, #tpu.memory_space<smem>>, %arg4: memref<16x1xf32, #tpu.memory_space<vmem>>) attributes {dimension_semantics = [#tpu.dimension_semantics<parallel>], iteration_bounds = array<i64: 1>, scalar_prefetch = 0 : i64, scratch_operands = 0 : i64, tpu.core_type = #tpu.core_type<tc>, window_params = [{transform_indices = @transform_0, window_bounds = array<i64: 16, 32>}, {pipeline_mode = #tpu.pipeline_mode<synchronous>, transform_indices = @transform_1, window_bounds = array<i64: 1, 32>}, {transform_indices = @transform_2, window_bounds = array<i64: 1>}, {transform_indices = @transform_3, window_bounds = array<i64: 16, 1>}]} {
    %c0 = arith.constant 0 : index
    %c0_0 = arith.constant 0 : index
    %0 = vector.load %arg1[%c0, %c0_0] : memref<16x32xf32, #tpu.memory_space<vmem>>, vector<16x32xf32>
    %c0_1 = arith.constant 0 : index
    %c0_2 = arith.constant 0 : index
    %1 = vector.load %arg2[%c0_1, %c0_2] : memref<1x32xf32, #tpu.memory_space<vmem>>, vector<1x32xf32>
    %c0_3 = arith.constant 0 : index
    %2 = memref.load %arg3[%c0_3] : memref<1xf32, #tpu.memory_space<smem>>
    %3 = vector.broadcast %1 : vector<1x32xf32> to vector<16x32xf32>
    %4 = arith.mulf %0, %3 : vector<16x32xf32>
    %cst = arith.constant dense<0.000000e+00> : vector<16xf32>
    %5 = vector.multi_reduction <add>, %4, %cst [1] : vector<16x32xf32> to vector<16xf32>
    %6 = vector.shape_cast %5 : vector<16xf32> to vector<16x1xf32>
    %7 = vector.broadcast %2 : f32 to vector<16x1xf32>
    %8 = arith.addf %6, %7 : vector<16x1xf32>
    %9 = math.absf %8 : vector<16x1xf32>
    %cst_4 = arith.constant 0.000000e+00 : f32
    %10 = vector.broadcast %cst_4 : f32 to vector<16x1xf32>
    %11 = arith.subf %10, %9 : vector<16x1xf32>
    %12 = math.exp %11 : vector<16x1xf32>
    %13 = math.log1p %12 : vector<16x1xf32>
    %cst_5 = arith.constant 0.000000e+00 : f32
    %14 = vector.broadcast %cst_5 : f32 to vector<16x1xf32>
    %15 = arith.maximumf %8, %14 : vector<16x1xf32>
    %16 = arith.addf %13, %15 : vector<16x1xf32>
    %cst_6 = arith.constant 1.000000e-03 : f32
    %cst_7 = arith.constant 1.000000e+02 : f32
    %17 = vector.broadcast %cst_6 : f32 to vector<16x1xf32>
    %18 = arith.maximumf %17, %16 : vector<16x1xf32>
    %19 = vector.broadcast %cst_7 : f32 to vector<16x1xf32>
    %20 = arith.minimumf %19, %18 : vector<16x1xf32>
    %c0_8 = arith.constant 0 : index
    %c0_9 = arith.constant 0 : index
    %21 = vector.load %arg4[%c0_8, %c0_9] : memref<16x1xf32, #tpu.memory_space<vmem>>, vector<16x1xf32>
    tpu.vector_store %arg4[%c0_8, %c0_9], %20 {strides = array<i32>} : memref<16x1xf32, #tpu.memory_space<vmem>>, vector<16x1xf32>,
    return
  }
  func.func @transform_0(%arg0: i32) -> (i32, i32) {
    %c0_i32 = arith.constant 0 : i32
    %c0_i32_0 = arith.constant 0 : i32
    return %arg0, %c0_i32 : i32, i32
  }
  func.func @transform_1(%arg0: i32) -> (i32, i32) {
    %c0_i32 = arith.constant 0 : i32
    %c0_i32_0 = arith.constant 0 : i32
    %c0_i32_1 = arith.constant 0 : i32
    return %c0_i32, %c0_i32_0 : i32, i32
  }
  func.func @transform_2(%arg0: i32) -> i32 {
    %c0_i32 = arith.constant 0 : i32
    %c0_i32_0 = arith.constant 0 : i32
    return %c0_i32 : i32
  }
  func.func @transform_3(%arg0: i32) -> (i32, i32) {
    %c0_i32 = arith.constant 0 : i32
    %c0_i32_0 = arith.constant 0 : i32
    return %arg0, %c0_i32 : i32, i32
  }
}

</mosaic_0001>

<llo_original>
// kernel: halfnormal_scale.1
$region0: #{halfnormal_scale.1}
  #allocation0 [shape = 'u32[]', space=smem, size = 0x4, offset = 0x4, fixed_abs, tag = 'smem constant byte address 0x4 - core index']
  #allocation1 [shape = 'u32[72,128]{1,0:T(1,128)}', space=vmem, size = 0x9000, scoped, tag = 'internal scratch']
  #allocation2 [shape = 'f32[1]{0:T(128)S(6)}', space=smem, size = 0x200, scoped, tag = 'scoped memory for halfnormal_scale.1']
  %s0 = inlined_call_operand.hbm [shape: f32[16,32], index: 0, kind: input, shape index: {}]
  %s1 = inlined_call_operand.vmem [shape: f32[1,32], index: 1, kind: input, shape index: {}]
  %s2 = inlined_call_operand.<no memory space> [shape: f32[1], index: 2, kind: input, shape index: {}]
  %s3 = inlined_call_operand.vmem [shape: f32[16,1], index: 3, kind: output, shape index: {}]
  %s4 = sld [smem:[#allocation0]]
  $region26: #{halfnormal_scale.1} parent=0
    _
  %s6 = ssub.s32 1, %s4
  %s7 = scalar_select 0, %s6, %s4
  %8 = sst [smem:[#allocation2]] %s2
  $region1: #{halfnormal_scale.1} parent=0
    #allocation3 [shape = 'u8[8192]{0}', space=vmem, size = 0x2000, scoped, tag = 'input window, operand 0, single buffered']
    #allocation4 [shape = 's32[1]{0}', space=sflag, size = 0x4, scoped, tag = 'scoped memory for halfnormal_scale.1']
    %9 = vsyncpa [#allocation4], 0
    // Predicated region
    $region2: #{halfnormal_scale.1} parent=1 // pred_check
      _
    $region3: #{halfnormal_scale.1} parent=1 // pred_check_branch
      %11 = sbr.rel (0) target = $region5
    $region4: #{halfnormal_scale.1} parent=1 // pred_region
      %13 = vsyncadd [#allocation4], 0
      %s14 = sshll.u32 %s0, 4
      %s15 = int_to_ptr.hbm [resolvable:$true] %s14
      %s16 = sshll.u32 [#allocation3], 4
      %s17 = int_to_ptr.vmem [resolvable:$true] %s16
      %22 = dma.hbm_to_vmem [thread:$0]  %s15, 256, %s17, [#allocation4], 128, 128, 8
    $region5: #{halfnormal_scale.1} parent=1 // pred_fallthru
      _
    // Predicated region
    $region6: #{halfnormal_scale.1} parent=1 // pred_check
      _
    $region7: #{halfnormal_scale.1} parent=1 // pred_check_branch
      %24 = sbr.rel (0) target = $region9
    $region8: #{halfnormal_scale.1} parent=1 // pred_region
      _
    $region9: #{halfnormal_scale.1} parent=1 // pred_fallthru
      _
    // Predicated region
    $region10: #{halfnormal_scale.1} parent=1 // pred_check
      _
    $region11: #{halfnormal_scale.1} parent=1 // pred_check_branch
      %26 = sbr.rel (0) target = $region13
    $region12: #{halfnormal_scale.1} parent=1 // pred_region
      _
    $region13: #{halfnormal_scale.1} parent=1 // pred_fallthru
      _
    // Predicated region
    $region14: #{halfnormal_scale.1} parent=1 // pred_check
      _
    $region15: #{halfnormal_scale.1} parent=1 // pred_check_branch
      %28 = sbr.rel (0) target = $region17
    $region16: #{halfnormal_scale.1} parent=1 // pred_region
      %30 = dma.done [#allocation4], 256
    $region17: #{halfnormal_scale.1} parent=1 // pred_fallthru
      _
    %v31 = vld [vmem:[#allocation3] sm:$0xff]
    %v32 = vld [vmem:[#allocation3 + $0x8] sm:$0xff]
    %v33 = vld [vmem:[%s1] sm:$0x1]
    %s34 = sld [smem:[#allocation2]]
    %v36 = vperm.slane %v33, 0
    %v38 = vmul.f32 %v31, %v36
    %v39 = vmul.f32 %v32, %v36
    %vm40 = vcmask 261120
    %v41 = vsel %vm40, %v38, 0.0
    %42 = vadd.xlane.f32.xlu0 %v41
    %v43 = vpop.xlane.xlu0 %42
    %v44 = vsel %vm40, %v39, 0.0
    %45 = vadd.xlane.f32.xlu0 %v44
    %v46 = vpop.xlane.xlu0 %45
    %v47 = vstv %s34
    %v48 = vadd.f32 %v43, %v47
    %v49 = vadd.f32 %v46, %v47
    %v50 = vand.u32 2147483647, %v48
    %v51 = vand.u32 2147483647, %v49
    %v52 = vsub.f32 0.0, %v50
    %v53 = vsub.f32 0.0, %v51
    %v54 = vmul.f32 %v52, 1.442695
    %v55 = vpow.pop %v54
    %v56 = vmul.f32 %v53, 1.442695
    %v57 = vpow.pop %v56
    %v58 = vadd.f32 %v55, 1.0
    %v59 = vlog2.pop %v58
    %v60 = vmul.f32 %v59, 0.6931472
    %v61 = vmul.f32 -0.5, %v55
    %v62 = vadd.f32 %v61, 1.0
    %v63 = vmul.f32 %v62, %v55
    %v64 = vand.u32 2147483647, %v55
    %vm65 = vcmp.lt.f32.partialorder %v64, 0.0004427343
    %v66 = vsel %vm65, %v63, %v60
    %v67 = vadd.f32 %v57, 1.0
    %v68 = vlog2.pop %v67
    %v69 = vmul.f32 %v68, 0.6931472
    %v70 = vmul.f32 -0.5, %v57
    %v71 = vadd.f32 %v70, 1.0
    %v72 = vmul.f32 %v71, %v57
    %v73 = vand.u32 2147483647, %v57
    %vm74 = vcmp.lt.f32.partialorder %v73, 0.0004427343
    %v75 = vsel %vm74, %v72, %v69
    %v76 = vmax.f32 %v48, 0.0
    %v77 = vmax.f32 %v49, 0.0
    %v78 = vadd.f32 %v66, %v76
    %v79 = vadd.f32 %v75, %v77
    %v80 = vmax.f32 %v78, 0.001
    %v81 = vmax.f32 %v79, 0.001
    %v82 = vmin.f32 %v80, 100.0
    %v83 = vmin.f32 %v81, 100.0
    %vm84 = vcmask 7168
    %85 = vst.msk [vmem:[%s3] sm:$0xff] %vm84, %v82
    %86 = vst.msk [vmem:[%s3 + $0x8] sm:$0xff] %vm84, %v83
    // Predicated region
    $region18: #{halfnormal_scale.1} parent=1 // pred_check
      _
    $region19: #{halfnormal_scale.1} parent=1 // pred_check_branch
      %88 = sbr.rel (0) target = $region21
    $region20: #{halfnormal_scale.1} parent=1 // pred_region
      _
    $region21: #{halfnormal_scale.1} parent=1 // pred_fallthru
      _
    // Predicated region
    $region22: #{halfnormal_scale.1} parent=1 // pred_check
      _
    $region23: #{halfnormal_scale.1} parent=1 // pred_check_branch
      %90 = sbr.rel (0) target = $region25
    $region24: #{halfnormal_scale.1} parent=1 // pred_region
      _
    $region25: #{halfnormal_scale.1} parent=1 // pred_fallthru
      _
    %91 = vsyncpa [#allocation4], 1

</llo_original>
